<compile_context>
chip_gen: v5e
topology: v5e:2x2
jax: 0.10.0
libtpu: 0.0.40
codegen_flags: <defaults>
</compile_context>

<pallas_src>
import jax
import jax.numpy as jnp
from jax.experimental import pallas as pl
from jax.experimental.pallas import tpu as pltpu


def gbag_kernel(x_ref, w1_ref, b1_ref, w2_ref, b2_ref, o_ref):
    # x_ref:  (B, I)   w1_ref: (I, H)   b1_ref: (1, H)
    # w2_ref: (H, O)   b2_ref: (1, O)   o_ref:  (B, O)
    h = jnp.dot(x_ref[...], w1_ref[...],
                preferred_element_type=jnp.float32) + b1_ref[...]
    # Exact sigmoid: exp on the EUP, exact reciprocal (EUP slack is huge here,
    # so the exact form costs nothing and avoids ~1e-3 approximation error).
    h = 1.0 / (1.0 + jnp.exp(-h))
    out = jnp.dot(h, w2_ref[...],
                  preferred_element_type=jnp.float32) + b2_ref[...]
    o_ref[...] = out.astype(o_ref.dtype)


@jax.jit
def gbag_forward(x, w1_t, b1, w2_t, b2):
    """Fused GBAG forward.  All inputs are pre-prepared (masked / transposed)
    at parameter build time; this function is exactly one pallas_call."""
    batch, input_size = x.shape
    hidden_size = w1_t.shape[1]
    output_size = w2_t.shape[1]

    cost = pl.CostEstimate(
        flops=2 * batch * (input_size * hidden_size
                           + hidden_size * output_size),
        transcendentals=batch * hidden_size,  # exp in the sigmoid
        bytes_accessed=4 * (x.size + w1_t.size + b1.size + w2_t.size
                            + b2.size + batch * output_size),
    )

    vmem_spec = pl.BlockSpec(memory_space=pltpu.MemorySpace.VMEM)
    return pl.pallas_call(
        gbag_kernel,
        out_shape=jax.ShapeDtypeStruct((batch, output_size), jnp.float32),
        # No grid: single invocation, whole problem (a few KB) lives in VMEM.
        in_specs=[vmem_spec, vmem_spec, vmem_spec, vmem_spec, vmem_spec],
        out_specs=vmem_spec,
        cost_estimate=cost,
    )(x, w1_t, b1, w2_t, b2)


def make_sparse_params(key, in_features, out_features, connections):
    """One-time parameter preparation for a SparseLinear layer.

    connections: int array (2, nnz) of (out_idx, in_idx) pairs, as in
    sparselinear.SparseLinear(connectivity=...).
    Returns (W^T masked, bias) with W^T of shape (in_features, out_features)
    and bias of shape (1, out_features) — exactly the layout the kernel wants,
    so the jitted forward does zero per-call parameter reshaping.
    """
    kw, kb = jax.random.split(key)
    bound = 1.0 / jnp.sqrt(in_features)
    w = jax.random.uniform(
        kw, (out_features, in_features), jnp.float32, -bound, bound)
    b = jax.random.uniform(kb, (1, out_features), jnp.float32, -bound, bound)
    mask = jnp.zeros((out_features, in_features), jnp.float32)
    mask = mask.at[connections[0], connections[1]].set(1.0)
    # TODO(synk): kernel does dense FLOPs over the masked weight; a truly
    # sparse (edge-list) formulation has no clean MXU-friendly Pallas mapping
    # at these sizes.
    return (w * mask).T, b  # (in, out), (1, out)


def reference_forward(x, w1_t, b1, w2_t, b2):
    h = jax.nn.sigmoid(x @ w1_t + b1)
    return h @ w2_t + b2


if __name__ == "__main__":
    # Small shapes implied by the module: input -> hidden -> output MLP.
    batch = 16
    input_size = 16
    hidden_size = 32
    output_size = 8

    key = jax.random.PRNGKey(0)
    kx, k1, k2, kc1, kc2 = jax.random.split(key, 5)

    # Deterministic synthetic connectivity (edge lists of the QBAF).
    nnz1 = 48
    conn1 = jnp.stack([
        jax.random.randint(kc1, (nnz1,), 0, hidden_size),
        jax.random.randint(jax.random.fold_in(kc1, 1), (nnz1,), 0, input_size),
    ])
    nnz2 = 24
    conn2 = jnp.stack([
        jax.random.randint(kc2, (nnz2,), 0, output_size),
        jax.random.randint(jax.random.fold_in(kc2, 1), (nnz2,), 0, hidden_size),
    ])

    # One-time parameter preparation (hoisted out of the forward).
    w1_t, b1 = make_sparse_params(k1, input_size, hidden_size, conn1)
    w2_t, b2 = make_sparse_params(k2, hidden_size, output_size, conn2)

    x = jax.random.normal(kx, (batch, input_size), jnp.float32)

    out = gbag_forward(x, w1_t, b1, w2_t, b2)
    out = jax.block_until_ready(out)

    # Pure-JAX reference check (exact sigmoid in-kernel -> tight tolerance).
    ref = reference_forward(x, w1_t, b1, w2_t, b2)
    assert out.shape == (batch, output_size)
    assert jnp.allclose(out, ref, atol=1e-5, rtol=1e-5)

    print("KERNEL_OK")
</pallas_src>

<mosaic_0001>
module attributes {stable_mosaic.version = 11 : i64} {
  func.func @gbag_kernel(%arg0: memref<16x16xf32, #tpu.memory_space<vmem>>, %arg1: memref<16x32xf32, #tpu.memory_space<vmem>>, %arg2: memref<1x32xf32, #tpu.memory_space<vmem>>, %arg3: memref<32x8xf32, #tpu.memory_space<vmem>>, %arg4: memref<1x8xf32, #tpu.memory_space<vmem>>, %arg5: memref<16x8xf32, #tpu.memory_space<vmem>>) attributes {dimension_semantics = [], scalar_prefetch = 0 : i64, scratch_operands = 0 : i64, tpu.core_type = #tpu.core_type<tc>} {
    %c0 = arith.constant 0 : index
    %c0_0 = arith.constant 0 : index
    %0 = vector.load %arg0[%c0, %c0_0] : memref<16x16xf32, #tpu.memory_space<vmem>>, vector<16x16xf32>
    %c0_1 = arith.constant 0 : index
    %c0_2 = arith.constant 0 : index
    %1 = vector.load %arg1[%c0_1, %c0_2] : memref<16x32xf32, #tpu.memory_space<vmem>>, vector<16x32xf32>
    %cst = arith.constant dense<0.000000e+00> : vector<16x32xf32>
    %2 = tpu.matmul %0, %1, %cst {dimension_numbers = #tpu.dot_dimension_numbers<[1], [0], [0], [1], [0, 0, 1, 1], [], []>} : vector<16x16xf32>, vector<16x32xf32>, vector<16x32xf32> -> vector<16x32xf32>
    %c0_3 = arith.constant 0 : index
    %c0_4 = arith.constant 0 : index
    %3 = vector.load %arg2[%c0_3, %c0_4] : memref<1x32xf32, #tpu.memory_space<vmem>>, vector<1x32xf32>
    %4 = vector.broadcast %3 : vector<1x32xf32> to vector<16x32xf32>
    %5 = arith.addf %2, %4 : vector<16x32xf32>
    %cst_5 = arith.constant 0.000000e+00 : f32
    %6 = vector.broadcast %cst_5 : f32 to vector<16x32xf32>
    %7 = arith.subf %6, %5 : vector<16x32xf32>
    %8 = math.exp %7 : vector<16x32xf32>
    %cst_6 = arith.constant 1.000000e+00 : f32
    %9 = vector.broadcast %cst_6 : f32 to vector<16x32xf32>
    %10 = arith.addf %9, %8 : vector<16x32xf32>
    %cst_7 = arith.constant 1.000000e+00 : f32
    %11 = vector.broadcast %cst_7 : f32 to vector<16x32xf32>
    %12 = arith.divf %11, %10 : vector<16x32xf32>
    %c0_8 = arith.constant 0 : index
    %c0_9 = arith.constant 0 : index
    %13 = vector.load %arg3[%c0_8, %c0_9] : memref<32x8xf32, #tpu.memory_space<vmem>>, vector<32x8xf32>
    %cst_10 = arith.constant dense<0.000000e+00> : vector<16x8xf32>
    %14 = tpu.matmul %12, %13, %cst_10 {dimension_numbers = #tpu.dot_dimension_numbers<[1], [0], [0], [1], [0, 0, 1, 1], [], []>} : vector<16x32xf32>, vector<32x8xf32>, vector<16x8xf32> -> vector<16x8xf32>
    %c0_11 = arith.constant 0 : index
    %c0_12 = arith.constant 0 : index
    %15 = vector.load %arg4[%c0_11, %c0_12] : memref<1x8xf32, #tpu.memory_space<vmem>>, vector<1x8xf32>
    %16 = vector.broadcast %15 : vector<1x8xf32> to vector<16x8xf32>
    %17 = arith.addf %14, %16 : vector<16x8xf32>
    %c0_13 = arith.constant 0 : index
    %c0_14 = arith.constant 0 : index
    %18 = vector.load %arg5[%c0_13, %c0_14] : memref<16x8xf32, #tpu.memory_space<vmem>>, vector<16x8xf32>
    tpu.vector_store %arg5[%c0_13, %c0_14], %17 {strides = array<i32>} : memref<16x8xf32, #tpu.memory_space<vmem>>, vector<16x8xf32>,
    return
  }
}

</mosaic_0001>

<llo_original>
// kernel: gbag_forward.1
$region0: #{gbag_forward.1}
  #allocation0 [shape = 'u32[]', space=smem, size = 0x4, offset = 0x4, fixed_abs, tag = 'smem constant byte address 0x4 - core index']
  #allocation1 [shape = 'u32[72,128]{1,0:T(1,128)}', space=vmem, size = 0x9000, scoped, tag = 'internal scratch']
  %s0 = inlined_call_operand.vmem [shape: f32[16,16], index: 0, kind: input, shape index: {}]
  %s1 = inlined_call_operand.vmem [shape: f32[16,32], index: 1, kind: input, shape index: {}]
  %s2 = inlined_call_operand.vmem [shape: f32[1,32], index: 2, kind: input, shape index: {}]
  %s3 = inlined_call_operand.vmem [shape: f32[32,8], index: 3, kind: input, shape index: {}]
  %s4 = inlined_call_operand.vmem [shape: f32[1,8], index: 4, kind: input, shape index: {}]
  %s5 = inlined_call_operand.vmem [shape: f32[16,8], index: 5, kind: output, shape index: {}]
  %s6 = sld [smem:[#allocation0]]
  $region30: #{gbag_forward.1} parent=0
    _
  %s8 = ssub.s32 1, %s6
  %s9 = scalar_select 0, %s8, %s6
  // Predicated region
  $region2: #{gbag_forward.1} parent=0 // pred_check
    _
  $region3: #{gbag_forward.1} parent=0 // pred_check_branch
    %11 = sbr.rel (0) target = $region5
  $region4: #{gbag_forward.1} parent=0 // pred_region
    _
  $region5: #{gbag_forward.1} parent=0 // pred_fallthru
    _
  // Predicated region
  $region6: #{gbag_forward.1} parent=0 // pred_check
    _
  $region7: #{gbag_forward.1} parent=0 // pred_check_branch
    %13 = sbr.rel (0) target = $region9
  $region8: #{gbag_forward.1} parent=0 // pred_region
    _
  $region9: #{gbag_forward.1} parent=0 // pred_fallthru
    _
  // Predicated region
  $region10: #{gbag_forward.1} parent=0 // pred_check
    _
  $region11: #{gbag_forward.1} parent=0 // pred_check_branch
    %15 = sbr.rel (0) target = $region13
  $region12: #{gbag_forward.1} parent=0 // pred_region
    _
  $region13: #{gbag_forward.1} parent=0 // pred_fallthru
    _
  // Predicated region
  $region14: #{gbag_forward.1} parent=0 // pred_check
    _
  $region15: #{gbag_forward.1} parent=0 // pred_check_branch
    %17 = sbr.rel (0) target = $region17
  $region16: #{gbag_forward.1} parent=0 // pred_region
    _
  $region17: #{gbag_forward.1} parent=0 // pred_fallthru
    _
  // Predicated region
  $region18: #{gbag_forward.1} parent=0 // pred_check
    _
  $region19: #{gbag_forward.1} parent=0 // pred_check_branch
    %19 = sbr.rel (0) target = $region21
  $region20: #{gbag_forward.1} parent=0 // pred_region
    _
  $region21: #{gbag_forward.1} parent=0 // pred_fallthru
    _
  %v20 = vld [vmem:[%s0] sm:$0xff]
  %v21 = vld [vmem:[%s0 + $0x8] sm:$0xff]
  %v22 = vld [vmem:[%s1] sm:$0xff]
  %v23 = vld [vmem:[%s1 + $0x8] sm:$0xff]
  %v24 = vld [vmem:[%s2] sm:$0x1]
  %v26 = vperm.slane %v24, 0
  %vm28 = vcmask 130048
  %v30 = vsel %vm28, %v20, 0
  %v33 = vsel %vm28, %v21, 0
  %35 = vmatpush.msra.mxu0 0.0
  %36 = vmatpush.msra.mxu0 0.0
  %37 = vmatpush.msra.mxu0 0.0
  %38 = vmatpush.msra.mxu0 0.0
  %39 = vmatpush.msra.mxu0 0.0
  %40 = vmatpush.msra.mxu0 0.0
  %41 = vmatpush.msra.mxu0 0.0
  %42 = vmatpush.msra.mxu0 0.0
  %43 = vmatpush.msra.mxu0 0.0
  %44 = vmatpush.msra.mxu0 0.0
  %45 = vmatpush.msra.mxu0 0.0
  %46 = vmatpush.msra.mxu0 0.0
  %47 = vmatpush.msra.mxu0 0.0
  %48 = vmatpush.msra.mxu0 0.0
  %49 = vmatpush.msra.mxu0 %v23
  %50 = vmatpush.msra.mxu0 %v22
  %51 = vmatmul.f32.gmra.mxu0 %v30
  %v52 = vpop.f32.mrf.mxu0
  %v53 = vadd.f32 %v26, %v52
  %54 = vmatmul.f32.gmra.mxu0 %v33
  %v55 = vpop.f32.mrf.mxu0
  %v56 = vadd.f32 %v26, %v55
  %57 = vdwg.mxu0
  %v58 = vsub.f32 0.0, %v53
  %v59 = vsub.f32 0.0, %v56
  %v60 = vmul.f32 %v58, 1.442695
  %v61 = vpow.pop %v60
  %v62 = vmul.f32 %v59, 1.442695
  %v63 = vpow.pop %v62
  %v64 = vadd.f32 %v61, 1.0
  %v65 = vadd.f32 %v63, 1.0
  %v66 = vrcp.pop %v64
  %v67 = vmul.f32 %v64, %v66
  %v68 = vsub.f32 1.0, %v67
  %v69 = vmul.f32 %v66, %v68
  %v70 = vadd.f32 %v66, %v69
  %vm71 = vweird.f32 %v64
  %vm72 = vweird.f32 %v66
  %vm73 = vmor %vm71, %vm72
  %v74 = vsel %vm73, %v66, %v70
  %v75 = vand.u32 2147483647, %v64
  %vm76 = vcmp.eq.f32.partialorder %v75, 8.507059e+37
  %v77 = vand.u32 %v64, 2147483648
  %v78 = vor.u32 1.1754944e-38, %v77
  %v79 = vsel %vm76, %v78, %v74
  %v80 = vmul.f32 1.0, %v79
  %v81 = vrcp.pop %v65
  %v82 = vmul.f32 %v65, %v81
  %v83 = vsub.f32 1.0, %v82
  %v84 = vmul.f32 %v81, %v83
  %v85 = vadd.f32 %v81, %v84
  %vm86 = vweird.f32 %v65
  %vm87 = vweird.f32 %v81
  %vm88 = vmor %vm86, %vm87
  %v89 = vsel %vm88, %v81, %v85
  %v90 = vand.u32 2147483647, %v65
  %vm91 = vcmp.eq.f32.partialorder %v90, 8.507059e+37
  %v92 = vand.u32 %v65, 2147483648
  %v93 = vor.u32 1.1754944e-38, %v92
  %v94 = vsel %vm91, %v93, %v89
  %v95 = vmul.f32 1.0, %v94
  %v96 = vld [vmem:[%s3] sm:$0xff]
  %v97 = vld [vmem:[%s3 + $0x8] sm:$0xff]
  %v98 = vld [vmem:[%s3 + $0x10] sm:$0xff]
  %v99 = vld [vmem:[%s3 + $0x18] sm:$0xff]
  %v100 = vld [vmem:[%s4] sm:$0x1]
  %v102 = vperm.slane %v100, 0
  %vm104 = vcmask 261120
  %v106 = vsel %vm104, %v80, 0
  %v109 = vsel %vm104, %v95, 0
  %111 = vmatpush.msra.mxu0 0.0
  %112 = vmatpush.msra.mxu0 0.0
  %113 = vmatpush.msra.mxu0 0.0
  %114 = vmatpush.msra.mxu0 0.0
  %115 = vmatpush.msra.mxu0 0.0
  %116 = vmatpush.msra.mxu0 0.0
  %117 = vmatpush.msra.mxu0 0.0
  %118 = vmatpush.msra.mxu0 0.0
  %119 = vmatpush.msra.mxu0 0.0
  %120 = vmatpush.msra.mxu0 0.0
  %121 = vmatpush.msra.mxu0 0.0
  %122 = vmatpush.msra.mxu0 0.0
  %123 = vmatpush.msra.mxu0 %v99
  %124 = vmatpush.msra.mxu0 %v98
  %125 = vmatpush.msra.mxu0 %v97
  %126 = vmatpush.msra.mxu0 %v96
  %127 = vmatmul.f32.gmra.mxu0 %v106
  %v128 = vpop.f32.mrf.mxu0
  %v129 = vadd.f32 %v102, %v128
  %130 = vmatmul.f32.gmra.mxu0 %v109
  %v131 = vpop.f32.mrf.mxu0
  %v132 = vadd.f32 %v102, %v131
  %133 = vdwg.mxu0
  %vm134 = vcmask 64512
  %135 = vst.msk [vmem:[%s5] sm:$0xff] %vm134, %v129
  %136 = vst.msk [vmem:[%s5 + $0x8] sm:$0xff] %vm134, %v132
  // Predicated region
  $region22: #{gbag_forward.1} parent=0 // pred_check
    _
  $region23: #{gbag_forward.1} parent=0 // pred_check_branch
    %138 = sbr.rel (0) target = $region25
  $region24: #{gbag_forward.1} parent=0 // pred_region
    _
  $region25: #{gbag_forward.1} parent=0 // pred_fallthru
    _
  // Predicated region
  $region26: #{gbag_forward.1} parent=0 // pred_check
    _
  $region27: #{gbag_forward.1} parent=0 // pred_check_branch
    %140 = sbr.rel (0) target = $region29
  $region28: #{gbag_forward.1} parent=0 // pred_region
    _
  $region29: #{gbag_forward.1} parent=0 // pred_fallthru
    _

</llo_original>
